<compile_context>
chip_gen: v7x
topology: tpu7x:2x2x1
jax: 0.10.0
libtpu: 0.0.40
codegen_flags: <defaults>
</compile_context>

<pallas_src>
import functools

import jax
import jax.numpy as jnp
from jax import lax
from jax.experimental import pallas as pl
from jax.experimental.pallas import tpu as pltpu


def _round_up(x, m):
    return (x + m - 1) // m * m


def _cnn_kernel(xc_ref, w_ref, b_ref, o_ref, panel_ref, mx_ref, *,
                nb, tl, k, e, l_out, needs_mask):
    """One (batch block, time tile) grid step.

    xc_ref    : (nb, tl + k - 1, E)  raw activation block (matmul dtype)
    w_ref     : (k*E, F_pad)         flattened conv weight (matmul dtype)
    b_ref     : (1, F_pad)           conv bias, f32
    o_ref     : (nb, F_pad)          f32 output (written on the last time tile)
    panel_ref : (nb*tl, k*E)         VMEM scratch: im2col panel
    mx_ref    : (nb, F_pad)          VMEM scratch: running max over time (f32)
    """
    t = pl.program_id(1)

    @pl.when(t == 0)
    def _():
        mx_ref[...] = jnp.full(mx_ref.shape, -jnp.inf, mx_ref.dtype)

    # Build the im2col panel in VMEM from k shifted slices of the raw block
    # (pure VMEM/VPU layout work; replaces the k-x expanded HBM im2col).
    x = xc_ref[...]                                          # (nb, tl+k-1, E)
    for j in range(k):
        panel_ref[:, j * e:(j + 1) * e] = x[:, j:j + tl, :].reshape(nb * tl, e)

    # Single large-K MXU matmul: conv values for every (batch, window) row.
    acc = jnp.dot(panel_ref[...], w_ref[...],
                  preferred_element_type=jnp.float32)        # (nb*tl, F_pad)
    acc = acc.reshape(nb, tl, acc.shape[-1])                 # (nb, tl, F_pad)

    if needs_mask:
        # Padded (invalid) time windows must never win the max.
        g = t * tl + lax.broadcasted_iota(jnp.int32, (1, tl, 1), 1)
        acc = jnp.where(g < l_out, acc, -jnp.inf)

    mx_ref[...] = jnp.maximum(mx_ref[...], jnp.max(acc, axis=1))

    @pl.when(t == pl.num_programs(1) - 1)
    def _():
        # Bias + ReLU after the time-max is exact (bias const over time,
        # ReLU monotone); elementwise work shrinks to (nb, F_pad).
        o_ref[...] = jnp.maximum(mx_ref[...] + b_ref[...], 0.0).astype(o_ref.dtype)


def cnn_forward(x_ncl, weight, bias, *, block_batch=64,
                matmul_dtype=jnp.bfloat16,
                vmem_budget_bytes=20 * 1024 * 1024,
                vmem_limit_bytes=48 * 1024 * 1024):
    """x_ncl: (N, e_char, L), weight: (f, e_char, k), bias: (f,) -> (N, f) f32."""
    n, e_char, l = x_ncl.shape
    f, e_w, k = weight.shape
    if e_w != e_char:
        raise ValueError("weight / input channel mismatch")
    l_out = l - k + 1
    if l_out <= 0:
        raise ValueError(f"sequence length {l} must be >= kernel width {k}")
    ke = k * e_char
    f_pad = _round_up(f, 128)                 # lane-dense output / MXU N dim
    isz = jnp.dtype(matmul_dtype).itemsize

    # Batch block: multiple of 8 dividing round_up(N, 8) -> minimal padding;
    # split into >= 2 blocks when possible (two v7x TensorCores).
    n_pad = _round_up(n, 8)
    nb = min(_round_up(block_batch, 8), n_pad)
    while n_pad % nb:
        nb -= 8
    if n_pad // nb < 2 and n_pad >= 16:
        nb = max(8, (n_pad // 2) // 8 * 8)
        while n_pad % nb:
            nb -= 8

    # Time tile: multiple of 16 (bf16 sublane packing), sized so the
    # double-buffered raw block + im2col panel + f32 matmul acc fit a budget.
    fixed = (2 * ke * f_pad * isz            # weight (double-buffered)
             + 3 * nb * f_pad * 4            # output bufs + running max
             + 2 * (k - 1) * nb * e_char * isz)
    per_tl = nb * (2 * e_char * isz + ke * isz + f_pad * 4)
    tl = max(16, (vmem_budget_bytes - fixed) // per_tl // 16 * 16)
    tl = min(tl, _round_up(l_out, 16))
    t_blocks = pl.cdiv(l_out, tl)
    l_out_pad = t_blocks * tl
    tl_in = tl + k - 1
    l_in_pad = l_out_pad + k - 1

    # ---- layout plumbing only (no conv FLOPs, no k-x im2col expansion) ----
    x_nle = jnp.transpose(x_ncl, (0, 2, 1))                       # (N, L, E)
    x_p = jnp.pad(x_nle, ((0, n_pad - n), (0, l_in_pad - l), (0, 0)))
    # Overlapping time chunks (overlap = k-1 rows, ~(k-1)/tl duplication).
    chunks = jnp.stack(
        [x_p[:, t * tl:t * tl + tl_in, :] for t in range(t_blocks)], axis=0
    ).astype(matmul_dtype)                                  # (T, N_pad, tl_in, E)

    # Weight (F, E, k) -> (k*E, F_pad): flat K index = j*E + c (matches panel).
    w_flat = jnp.transpose(weight, (2, 1, 0)).reshape(ke, f)
    w_flat = jnp.pad(w_flat, ((0, 0), (0, f_pad - f))).astype(matmul_dtype)
    b_1f = jnp.pad(bias, (0, f_pad - f)).reshape(1, f_pad).astype(jnp.float32)

    kernel = functools.partial(
        _cnn_kernel, nb=nb, tl=tl, k=k, e=e_char, l_out=l_out,
        needs_mask=(l_out_pad != l_out))

    grid = (n_pad // nb, t_blocks)

    out = pl.pallas_call(
        kernel,
        out_shape=jax.ShapeDtypeStruct((n_pad, f_pad), jnp.float32),
        grid_spec=pltpu.PrefetchScalarGridSpec(
            num_scalar_prefetch=0,
            grid=grid,
            in_specs=[
                # Raw activation block per (batch, time) step; weight/bias have
                # constant index maps so they stay VMEM-resident across steps.
                pl.BlockSpec((None, nb, tl_in, e_char), lambda i, t: (t, i, 0, 0)),
                pl.BlockSpec((ke, f_pad), lambda i, t: (0, 0)),
                pl.BlockSpec((1, f_pad), lambda i, t: (0, 0)),
            ],
            out_specs=pl.BlockSpec((nb, f_pad), lambda i, t: (i, 0)),
            scratch_shapes=[
                pltpu.VMEM((nb * tl, ke), matmul_dtype),    # im2col panel
                pltpu.VMEM((nb, f_pad), jnp.float32),       # running time-max
            ],
        ),
        compiler_params=pltpu.CompilerParams(
            dimension_semantics=("parallel", "arbitrary"),
            vmem_limit_bytes=vmem_limit_bytes,
        ),
        cost_estimate=pl.CostEstimate(
            flops=2 * n_pad * l_out_pad * ke * f_pad,
            transcendentals=0,
            bytes_accessed=(t_blocks * n_pad * tl_in * e_char * isz
                            + ke * f_pad * isz + n_pad * f_pad * 4),
        ),
    )(chunks, w_flat, b_1f)

    return out[:n, :f]


def _reference(x_ncl, weight, bias, matmul_dtype=jnp.bfloat16):
    """Pure-JAX reference of the PyTorch forward; matmul inputs rounded to the
    same dtype the kernel feeds the MXU (accumulation stays f32, as on TPU)."""
    n, e_char, l = x_ncl.shape
    f, _, k = weight.shape
    l_out = l - k + 1
    xr = x_ncl.astype(matmul_dtype).astype(jnp.float32)
    wr = weight.astype(matmul_dtype).astype(jnp.float32)
    conv = jnp.zeros((n, f, l_out), jnp.float32)
    for j in range(k):
        conv = conv + jnp.einsum(
            "ncl,oc->nol", xr[:, :, j:j + l_out], wr[:, :, j])
    conv = conv + bias[None, :, None]
    return jnp.max(jax.nn.relu(conv), axis=-1)


if __name__ == "__main__":
    # Small, forward-consistent shapes.
    N, E_CHAR, L = 2, 8, 16        # batch, char-embedding dim, seq length
    K, F = 5, 32                   # conv kernel width, num filters

    key = jax.random.PRNGKey(0)
    kx, kw, kb = jax.random.split(key, 3)

    # kaiming_normal_-style conv weight init: fan_in = e_char*k, std = sqrt(2/fan_in).
    fan_in = E_CHAR * K
    weight = jax.random.normal(kw, (F, E_CHAR, K), jnp.float32) * jnp.sqrt(2.0 / fan_in)
    # PyTorch Conv1d default bias init: U(-1/sqrt(fan_in), 1/sqrt(fan_in)).
    bound = 1.0 / jnp.sqrt(fan_in)
    bias = jax.random.uniform(kb, (F,), jnp.float32, minval=-bound, maxval=bound)

    x = jax.random.normal(kx, (N, E_CHAR, L), jnp.float32)

    out = cnn_forward(x, weight, bias)
    out = jax.block_until_ready(out)

    ref = _reference(x, weight, bias)
    assert out.shape == (N, F), out.shape
    err = float(jnp.max(jnp.abs(out - ref)))
    assert err < 2e-3, f"mismatch vs reference: max abs err {err}"
    print("KERNEL_OK")
</pallas_src>

<mosaic_0001>
module attributes {stable_mosaic.version = 11 : i64} {
  func.func @_cnn_kernel(%arg0: i32, %arg1: i32, %arg2: memref<1x8x20x8xbf16, #tpu.memory_space<vmem>>, %arg3: memref<40x128xbf16, #tpu.memory_space<vmem>>, %arg4: memref<1x128xf32, #tpu.memory_space<vmem>>, %arg5: memref<8x128xf32, #tpu.memory_space<vmem>>, %arg6: memref<128x40xbf16, #tpu.memory_space<vmem>>, %arg7: memref<8x128xf32, #tpu.memory_space<vmem>>) attributes {dimension_semantics = [#tpu.dimension_semantics<parallel>, #tpu.dimension_semantics<arbitrary>], iteration_bounds = array<i64: 1, 1>, scalar_prefetch = 0 : i64, scratch_operands = 2 : i64, tpu.core_type = #tpu.core_type<tc>, window_params = [{transform_indices = @transform_0, window_bounds = array<i64: 1, 8, 20, 8>}, {pipeline_mode = #tpu.pipeline_mode<synchronous>, transform_indices = @transform_1, window_bounds = array<i64: 40, 128>}, {pipeline_mode = #tpu.pipeline_mode<synchronous>, transform_indices = @transform_2, window_bounds = array<i64: 1, 128>}, {transform_indices = @transform_3, window_bounds = array<i64: 8, 128>}]} {
    %c0_i32 = arith.constant 0 : i32
    %0 = arith.cmpi eq, %arg1, %c0_i32 : i32
    %1 = arith.extui %0 : i1 to i32
    %c0_i32_0 = arith.constant 0 : i32
    %2 = arith.cmpi ne, %1, %c0_i32_0 : i32
    scf.if %2 {
      %cst_22 = arith.constant 0xFF800000 : f32
      %41 = vector.broadcast %cst_22 : f32 to vector<8x128xf32>
      %c0_23 = arith.constant 0 : index
      %c0_24 = arith.constant 0 : index
      %42 = vector.load %arg7[%c0_23, %c0_24] : memref<8x128xf32, #tpu.memory_space<vmem>>, vector<8x128xf32>
      tpu.vector_store %arg7[%c0_23, %c0_24], %41 {strides = array<i32>} : memref<8x128xf32, #tpu.memory_space<vmem>>, vector<8x128xf32>,
    } else {
    }
    %c0 = arith.constant 0 : index
    %c0_1 = arith.constant 0 : index
    %c0_2 = arith.constant 0 : index
    %c0_3 = arith.constant 0 : index
    %3 = vector.load %arg2[%c0, %c0_1, %c0_2, %c0_3] : memref<1x8x20x8xbf16, #tpu.memory_space<vmem>>, vector<1x8x20x8xbf16>
    %4 = vector.shape_cast %3 : vector<1x8x20x8xbf16> to vector<8x20x8xbf16>
    %5 = vector.extract_strided_slice %4 {offsets = [0, 0, 0], sizes = [8, 16, 8], strides = [1, 1, 1]} : vector<8x20x8xbf16> to vector<8x16x8xbf16>
    %6 = vector.shape_cast %5 : vector<8x16x8xbf16> to vector<128x8xbf16>
    %c0_4 = arith.constant 0 : index
    %c0_5 = arith.constant 0 : index
    %7 = vector.load %arg6[%c0_4, %c0_5] : memref<128x40xbf16, #tpu.memory_space<vmem>>, vector<128x8xbf16>
    tpu.vector_store %arg6[%c0_4, %c0_5], %6 {strides = array<i32>} : memref<128x40xbf16, #tpu.memory_space<vmem>>, vector<128x8xbf16>,
    %8 = vector.extract_strided_slice %4 {offsets = [0, 1, 0], sizes = [8, 16, 8], strides = [1, 1, 1]} : vector<8x20x8xbf16> to vector<8x16x8xbf16>
    %9 = vector.shape_cast %8 : vector<8x16x8xbf16> to vector<128x8xbf16>
    %c0_6 = arith.constant 0 : index
    %c8 = arith.constant 8 : index
    %10 = vector.load %arg6[%c0_6, %c8] : memref<128x40xbf16, #tpu.memory_space<vmem>>, vector<128x8xbf16>
    tpu.vector_store %arg6[%c0_6, %c8], %9 {strides = array<i32>} : memref<128x40xbf16, #tpu.memory_space<vmem>>, vector<128x8xbf16>,
    %11 = vector.extract_strided_slice %4 {offsets = [0, 2, 0], sizes = [8, 16, 8], strides = [1, 1, 1]} : vector<8x20x8xbf16> to vector<8x16x8xbf16>
    %12 = vector.shape_cast %11 : vector<8x16x8xbf16> to vector<128x8xbf16>
    %c0_7 = arith.constant 0 : index
    %c16 = arith.constant 16 : index
    %13 = vector.load %arg6[%c0_7, %c16] : memref<128x40xbf16, #tpu.memory_space<vmem>>, vector<128x8xbf16>
    tpu.vector_store %arg6[%c0_7, %c16], %12 {strides = array<i32>} : memref<128x40xbf16, #tpu.memory_space<vmem>>, vector<128x8xbf16>,
    %14 = vector.extract_strided_slice %4 {offsets = [0, 3, 0], sizes = [8, 16, 8], strides = [1, 1, 1]} : vector<8x20x8xbf16> to vector<8x16x8xbf16>
    %15 = vector.shape_cast %14 : vector<8x16x8xbf16> to vector<128x8xbf16>
    %c0_8 = arith.constant 0 : index
    %c24 = arith.constant 24 : index
    %16 = vector.load %arg6[%c0_8, %c24] : memref<128x40xbf16, #tpu.memory_space<vmem>>, vector<128x8xbf16>
    tpu.vector_store %arg6[%c0_8, %c24], %15 {strides = array<i32>} : memref<128x40xbf16, #tpu.memory_space<vmem>>, vector<128x8xbf16>,
    %17 = vector.extract_strided_slice %4 {offsets = [0, 4, 0], sizes = [8, 16, 8], strides = [1, 1, 1]} : vector<8x20x8xbf16> to vector<8x16x8xbf16>
    %18 = vector.shape_cast %17 : vector<8x16x8xbf16> to vector<128x8xbf16>
    %c0_9 = arith.constant 0 : index
    %c32 = arith.constant 32 : index
    %19 = vector.load %arg6[%c0_9, %c32] : memref<128x40xbf16, #tpu.memory_space<vmem>>, vector<128x8xbf16>
    tpu.vector_store %arg6[%c0_9, %c32], %18 {strides = array<i32>} : memref<128x40xbf16, #tpu.memory_space<vmem>>, vector<128x8xbf16>,
    %c0_10 = arith.constant 0 : index
    %c0_11 = arith.constant 0 : index
    %20 = vector.load %arg6[%c0_10, %c0_11] : memref<128x40xbf16, #tpu.memory_space<vmem>>, vector<128x40xbf16>
    %c0_12 = arith.constant 0 : index
    %c0_13 = arith.constant 0 : index
    %21 = vector.load %arg3[%c0_12, %c0_13] : memref<40x128xbf16, #tpu.memory_space<vmem>>, vector<40x128xbf16>
    %cst = arith.constant dense<0.000000e+00> : vector<128x128xf32>
    %22 = tpu.matmul %20, %21, %cst {dimension_numbers = #tpu.dot_dimension_numbers<[1], [0], [0], [1], [0, 0, 1, 1], [], []>} : vector<128x40xbf16>, vector<40x128xbf16>, vector<128x128xf32> -> vector<128x128xf32>
    %23 = vector.shape_cast %22 : vector<128x128xf32> to vector<8x16x128xf32>
    %c16_i32 = arith.constant 16 : i32
    %24 = arith.muli %arg1, %c16_i32 : i32
    %25 = tpu.iota {dimensions = array<i32: 1>} : vector<1x16x1xi32>
    %26 = vector.broadcast %24 : i32 to vector<1x16x1xi32>
    %27 = arith.addi %26, %25 : vector<1x16x1xi32>
    %c12_i32 = arith.constant 12 : i32
    %28 = vector.broadcast %c12_i32 : i32 to vector<1x16x1xi32>
    %29 = arith.cmpi slt, %27, %28 : vector<1x16x1xi32>
    %cst_14 = arith.constant 0xFF800000 : f32
    %30 = vector.shape_cast %29 : vector<1x16x1xi1> to vector<1x16x1xi1>
    %31 = vector.broadcast %30 : vector<1x16x1xi1> to vector<8x16x128xi1>
    %32 = vector.broadcast %cst_14 : f32 to vector<8x16x128xf32>
    %33 = arith.select %31, %23, %32 : vector<8x16x128xi1>, vector<8x16x128xf32>
    %c0_15 = arith.constant 0 : index
    %c0_16 = arith.constant 0 : index
    %34 = vector.load %arg7[%c0_15, %c0_16] : memref<8x128xf32, #tpu.memory_space<vmem>>, vector<8x128xf32>
    %cst_17 = arith.constant dense<0xFF800000> : vector<8x128xf32>
    %35 = vector.multi_reduction <maximumf>, %33, %cst_17 [1] : vector<8x16x128xf32> to vector<8x128xf32>
    %36 = arith.maximumf %34, %35 : vector<8x128xf32>
    %c0_18 = arith.constant 0 : index
    %c0_19 = arith.constant 0 : index
    %37 = vector.load %arg7[%c0_18, %c0_19] : memref<8x128xf32, #tpu.memory_space<vmem>>, vector<8x128xf32>
    tpu.vector_store %arg7[%c0_18, %c0_19], %36 {strides = array<i32>} : memref<8x128xf32, #tpu.memory_space<vmem>>, vector<8x128xf32>,
    %c0_i32_20 = arith.constant 0 : i32
    %38 = arith.cmpi eq, %arg1, %c0_i32_20 : i32
    %39 = arith.extui %38 : i1 to i32
    %c0_i32_21 = arith.constant 0 : i32
    %40 = arith.cmpi ne, %39, %c0_i32_21 : i32
    scf.if %40 {
      %c0_22 = arith.constant 0 : index
      %c0_23 = arith.constant 0 : index
      %41 = vector.load %arg7[%c0_22, %c0_23] : memref<8x128xf32, #tpu.memory_space<vmem>>, vector<8x128xf32>
      %c0_24 = arith.constant 0 : index
      %c0_25 = arith.constant 0 : index
      %42 = vector.load %arg4[%c0_24, %c0_25] : memref<1x128xf32, #tpu.memory_space<vmem>>, vector<1x128xf32>
      %43 = vector.broadcast %42 : vector<1x128xf32> to vector<8x128xf32>
      %44 = arith.addf %41, %43 : vector<8x128xf32>
      %cst_26 = arith.constant 0.000000e+00 : f32
      %45 = vector.broadcast %cst_26 : f32 to vector<8x128xf32>
      %46 = arith.maximumf %44, %45 : vector<8x128xf32>
      %c0_27 = arith.constant 0 : index
      %c0_28 = arith.constant 0 : index
      %47 = vector.load %arg5[%c0_27, %c0_28] : memref<8x128xf32, #tpu.memory_space<vmem>>, vector<8x128xf32>
      tpu.vector_store %arg5[%c0_27, %c0_28], %46 {strides = array<i32>} : memref<8x128xf32, #tpu.memory_space<vmem>>, vector<8x128xf32>,
    } else {
    }
    return
  }
  func.func @transform_0(%arg0: i32, %arg1: i32) -> (i32, i32, i32, i32) {
    %c0_i32 = arith.constant 0 : i32
    %c0_i32_0 = arith.constant 0 : i32
    %c0_i32_1 = arith.constant 0 : i32
    return %arg1, %arg0, %c0_i32, %c0_i32_0 : i32, i32, i32, i32
  }
  func.func @transform_1(%arg0: i32, %arg1: i32) -> (i32, i32) {
    %c0_i32 = arith.constant 0 : i32
    %c0_i32_0 = arith.constant 0 : i32
    %c0_i32_1 = arith.constant 0 : i32
    return %c0_i32, %c0_i32_0 : i32, i32
  }
  func.func @transform_2(%arg0: i32, %arg1: i32) -> (i32, i32) {
    %c0_i32 = arith.constant 0 : i32
    %c0_i32_0 = arith.constant 0 : i32
    %c0_i32_1 = arith.constant 0 : i32
    return %c0_i32, %c0_i32_0 : i32, i32
  }
  func.func @transform_3(%arg0: i32, %arg1: i32) -> (i32, i32) {
    %c0_i32 = arith.constant 0 : i32
    %c0_i32_0 = arith.constant 0 : i32
    return %arg0, %c0_i32 : i32, i32
  }
}

</mosaic_0001>

<llo_original>
// kernel: tpu_custom_call.1
$region0: #{tpu_custom_call.1}
  #allocation0 [shape = 'u32[]', space=smem, size = 0x4, offset = 0x4, fixed_abs, tag = 'smem constant byte address 0x4 - core index']
  #allocation1 [shape = 'u32[144,128]{1,0:T(1,128)}', space=vmem, size = 0x12000, scoped, tag = 'internal scratch']
  #allocation2 [shape = 'bf16[128,40]{1,0:T(16,128)(2,1)}', space=vmem, size = 0x8000, scoped, tag = 'scratch operand']
  #allocation3 [shape = 'f32[8,128]{1,0:T(8,128)}', space=vmem, size = 0x1000, scoped, tag = 'scratch operand']
  %s0 = inlined_call_operand.vmem [shape: bf16[1,8,20,8], index: 0, kind: input, shape index: {}]
  %s1 = inlined_call_operand.vmem [shape: bf16[40,128], index: 1, kind: input, shape index: {}]
  %s2 = inlined_call_operand.vmem [shape: f32[1,128], index: 2, kind: input, shape index: {}]
  %s3 = inlined_call_operand.hbm [shape: f32[8,128], index: 3, kind: output, shape index: {}]
  %s4 = sld [smem:[#allocation0]]
  $region30: #{tpu_custom_call.1} parent=0
    _
  %s6 = ssub.s32 1, %s4
  %s7 = scalar_select 0, %s6, %s4
  $region1: #{tpu_custom_call.1} parent=0
    #allocation4 [shape = 'u8[4096]{0}', space=vmem, size = 0x1000, scoped, tag = 'output window, operand 0, single buffered']
    #allocation5 [shape = 's32[1]{0}', space=sflag, size = 0x4, scoped, tag = 'scoped memory for tpu_custom_call.1']
    %8 = vsyncpa [#allocation5], 0
    // Predicated region
    $region2: #{tpu_custom_call.1} parent=1 // pred_check
      _
    $region3: #{tpu_custom_call.1} parent=1 // pred_check_branch
      %10 = sbr.rel (0) target = $region5
    $region4: #{tpu_custom_call.1} parent=1 // pred_region
      _
    $region5: #{tpu_custom_call.1} parent=1 // pred_fallthru
      _
    // Predicated region
    $region6: #{tpu_custom_call.1} parent=1 // pred_check
      _
    $region7: #{tpu_custom_call.1} parent=1 // pred_check_branch
      %12 = sbr.rel (0) target = $region9
    $region8: #{tpu_custom_call.1} parent=1 // pred_region
      _
    $region9: #{tpu_custom_call.1} parent=1 // pred_fallthru
      _
    // Predicated region
    $region10: #{tpu_custom_call.1} parent=1 // pred_check
      _
    $region11: #{tpu_custom_call.1} parent=1 // pred_check_branch
      %14 = sbr.rel (0) target = $region13
    $region12: #{tpu_custom_call.1} parent=1 // pred_region
      _
    $region13: #{tpu_custom_call.1} parent=1 // pred_fallthru
      _
    %p16 = scmp.eq.s32.totalorder 0, 0
    // Predicated region
    $region14: #{tpu_custom_call.1} parent=1 // pred_check
      %p17 = pneg %p16
    $region15: #{tpu_custom_call.1} parent=1 // pred_check_branch
      %19 = sbr.rel (%p17) target = $region17
    $region16: #{tpu_custom_call.1} parent=1 // pred_region
      %20 = vst [vmem:[#allocation3] sm:$0xff] -inf
    $region17: #{tpu_custom_call.1} parent=1 // pred_fallthru
      _
    %v21 = vld [vmem:[%s0] sm:$0xf]
    %v22 = vld [vmem:[%s0 + $0x4] sm:$0xf]
    %v23 = vld [vmem:[%s0 + $0x8] sm:$0x3]
    %v24 = vld [vmem:[%s0 + $0xc] sm:$0xf]
    %v25 = vld [vmem:[%s0 + $0x10] sm:$0xf]
    %v26 = vld [vmem:[%s0 + $0x14] sm:$0x3]
    %v27 = vld [vmem:[%s0 + $0x18] sm:$0xf]
    %v28 = vld [vmem:[%s0 + $0x1c] sm:$0xf]
    %v29 = vld [vmem:[%s0 + $0x20] sm:$0x3]
    %v30 = vld [vmem:[%s0 + $0x24] sm:$0xf]
    %v31 = vld [vmem:[%s0 + $0x28] sm:$0xf]
    %v32 = vld [vmem:[%s0 + $0x2c] sm:$0x3]
    %v33 = vld [vmem:[%s0 + $0x30] sm:$0xf]
    %v34 = vld [vmem:[%s0 + $0x34] sm:$0xf]
    %v35 = vld [vmem:[%s0 + $0x38] sm:$0x3]
    %v36 = vld [vmem:[%s0 + $0x3c] sm:$0xf]
    %v37 = vld [vmem:[%s0 + $0x40] sm:$0xf]
    %v38 = vld [vmem:[%s0 + $0x44] sm:$0x3]
    %v39 = vld [vmem:[%s0 + $0x48] sm:$0xf]
    %v40 = vld [vmem:[%s0 + $0x4c] sm:$0xf]
    %v41 = vld [vmem:[%s0 + $0x50] sm:$0x3]
    %v42 = vld [vmem:[%s0 + $0x54] sm:$0xf]
    %v43 = vld [vmem:[%s0 + $0x58] sm:$0xf]
    %v44 = vld [vmem:[%s0 + $0x5c] sm:$0x3]
    %v61 = vunpack.c.l.b16 %v21
    %v62 = vunpack.c.l.b16 %v22
    %v63 = vunpack.c.l.b16 %v24
    %v64 = vunpack.c.l.b16 %v25
    %v65 = vunpack.c.l.b16 %v27
    %v66 = vunpack.c.l.b16 %v28
    %v67 = vunpack.c.l.b16 %v30
    %v68 = vunpack.c.l.b16 %v31
    %v69 = vunpack.c.l.b16 %v33
    %v70 = vunpack.c.l.b16 %v34
    %v71 = vunpack.c.l.b16 %v36
    %v72 = vunpack.c.l.b16 %v37
    %v73 = vunpack.c.l.b16 %v39
    %v74 = vunpack.c.l.b16 %v40
    %v75 = vunpack.c.l.b16 %v42
    %v76 = vunpack.c.l.b16 %v43
    %v77 = vpack.c.b16 %v62, %v61
    %v78 = vpack.c.b16 %v64, %v63
    %v79 = vpack.c.b16 %v66, %v65
    %v80 = vpack.c.b16 %v68, %v67
    %v81 = vpack.c.b16 %v70, %v69
    %v82 = vpack.c.b16 %v72, %v71
    %v83 = vpack.c.b16 %v74, %v73
    %v84 = vpack.c.b16 %v76, %v75
    %vm93 = vcmask 64512
    %94 = vst.msk [vmem:[#allocation2] sm:$0xff] %vm93, %v77
    %95 = vst.msk [vmem:[#allocation2 + $0x8] sm:$0xff] %vm93, %v78
    %96 = vst.msk [vmem:[#allocation2 + $0x10] sm:$0xff] %vm93, %v79
    %97 = vst.msk [vmem:[#allocation2 + $0x18] sm:$0xff] %vm93, %v80
    %98 = vst.msk [vmem:[#allocation2 + $0x20] sm:$0xff] %vm93, %v81
    %99 = vst.msk [vmem:[#allocation2 + $0x28] sm:$0xff] %vm93, %v82
    %100 = vst.msk [vmem:[#allocation2 + $0x30] sm:$0xff] %vm93, %v83
    %101 = vst.msk [vmem:[#allocation2 + $0x38] sm:$0xff] %vm93, %v84
    %vm102 = vsmask.f32 3328
    %vm103 = vsmask.f32 7440
    %vm104 = vmor %vm102, %vm103
    %v106 = vshrl.u32 %v21, 16
    %v108 = vrot.slane %v106, 4
    %v109 = vshll.u32 %v21, 16
    %v111 = vrot.slane %v109, 5
    %v112 = vor.u32 %v108, %v111
    %v113 = vrot.slane %v112, 4
    %v115 = vshll.u32 %v22, 16
    %v117 = vrot.slane %v115, 5
    %v118 = vsel %vm104, %v113, %v117
    %v119 = vshrl.u32 %v22, 16
    %v121 = vrot.slane %v119, 4
    %v122 = vor.u32 %v121, %v117
    %v123 = vrot.slane %v122, 4
    %v125 = vshll.u32 %v23, 16
    %v127 = vrot.slane %v125, 5
    %v128 = vsel %vm104, %v123, %v127
    %v130 = vshrl.u32 %v24, 16
    %v132 = vrot.slane %v130, 4
    %v133 = vshll.u32 %v24, 16
    %v135 = vrot.slane %v133, 5
    %v136 = vor.u32 %v132, %v135
    %v137 = vrot.slane %v136, 4
    %v139 = vshll.u32 %v25, 16
    %v141 = vrot.slane %v139, 5
    %v142 = vsel %vm104, %v137, %v141
    %v143 = vshrl.u32 %v25, 16
    %v145 = vrot.slane %v143, 4
    %v146 = vor.u32 %v145, %v141
    %v147 = vrot.slane %v146, 4
    %v149 = vshll.u32 %v26, 16
    %v151 = vrot.slane %v149, 5
    %v152 = vsel %vm104, %v147, %v151
    %v154 = vshrl.u32 %v27, 16
    %v156 = vrot.slane %v154, 4
    %v157 = vshll.u32 %v27, 16
    %v159 = vrot.slane %v157, 5
    %v160 = vor.u32 %v156, %v159
    %v161 = vrot.slane %v160, 4
    %v163 = vshll.u32 %v28, 16
    %v165 = vrot.slane %v163, 5
    %v166 = vsel %vm104, %v161, %v165
    %v167 = vshrl.u32 %v28, 16
    %v169 = vrot.slane %v167, 4
    %v170 = vor.u32 %v169, %v165
    %v171 = vrot.slane %v170, 4
    %v173 = vshll.u32 %v29, 16
    %v175 = vrot.slane %v173, 5
    %v176 = vsel %vm104, %v171, %v175
    %v178 = vshrl.u32 %v30, 16
    %v180 = vrot.slane %v178, 4
    %v181 = vshll.u32 %v30, 16
    %v183 = vrot.slane %v181, 5
    %v184 = vor.u32 %v180, %v183
    %v185 = vrot.slane %v184, 4
    %v187 = vshll.u32 %v31, 16
    %v189 = vrot.slane %v187, 5
    %v190 = vsel %vm104, %v185, %v189
    %v191 = vshrl.u32 %v31, 16
    %v193 = vrot.slane %v191, 4
    %v194 = vor.u32 %v193, %v189
    %v195 = vrot.slane %v194, 4
    %v197 = vshll.u32 %v32, 16
    %v199 = vrot.slane %v197, 5
    %v200 = vsel %vm104, %v195, %v199
    %v202 = vshrl.u32 %v33, 16
    %v204 = vrot.slane %v202, 4
    %v205 = vshll.u32 %v33, 16
    %v207 = vrot.slane %v205, 5
    %v208 = vor.u32 %v204, %v207
    %v209 = vrot.slane %v208, 4
    %v211 = vshll.u32 %v34, 16
    %v213 = vrot.slane %v211, 5
    %v214 = vsel %vm104, %v209, %v213
    %v215 = vshrl.u32 %v34, 16
    %v217 = vrot.slane %v215, 4
    %v218 = vor.u32 %v217, %v213
    %v219 = vrot.slane %v218, 4
    %v221 = vshll.u32 %v35, 16
    %v223 = vrot.slane %v221, 5
    %v224 = vsel %vm104, %v219, %v223
    %v226 = vshrl.u32 %v36, 16
    %v228 = vrot.slane %v226, 4
    %v229 = vshll.u32 %v36, 16
    %v231 = vrot.slane %v229, 5
    %v232 = vor.u32 %v228, %v231
    %v233 = vrot.slane %v232, 4
    %v235 = vshll.u32 %v37, 16
    %v237 = vrot.slane %v235, 5
    %v238 = vsel %vm104, %v233, %v237
    %v239 = vshrl.u32 %v37, 16
    %v241 = vrot.slane %v239, 4
    %v242 = vor.u32 %v241, %v237
    %v243 = vrot.slane %v242, 4
    %v245 = vshll.u32 %v38, 16
    %v247 = vrot.slane %v245, 5
    %v248 = vsel %vm104, %v243, %v247
    %v250 = vshrl.u32 %v39, 16
    %v252 = vrot.slane %v250, 4
    %v253 = vshll.u32 %v39, 16
    %v255 = vrot.slane %v253, 5
    %v256 = vor.u32 %v252, %v255
    %v257 = vrot.slane %v256, 4
    %v259 = vshll.u32 %v40, 16
    %v261 = vrot.slane %v259, 5
    %v262 = vsel %vm104, %v257, %v261
    %v263 = vshrl.u32 %v40, 16
    %v265 = vrot.slane %v263, 4
    %v266 = vor.u32 %v265, %v261
    %v267 = vrot.slane %v266, 4
    %v269 = vshll.u32 %v41, 16
    %v271 = vrot.slane %v269, 5
    %v272 = vsel %vm104, %v267, %v271
    %v274 = vshrl.u32 %v42, 16
    %v276 = vrot.slane %v274, 4
    %v277 = vshll.u32 %v42, 16
    %v279 = vrot.slane %v277, 5
    %v280 = vor.u32 %v276, %v279
    %v281 = vrot.slane %v280, 4
    %v283 = vshll.u32 %v43, 16
    %v285 = vrot.slane %v283, 5
    %v286 = vsel %vm104, %v281, %v285
    %v287 = vshrl.u32 %v43, 16
    %v289 = vrot.slane %v287, 4
    %v290 = vor.u32 %v289, %v285
    %v291 = vrot.slane %v290, 4
    %v293 = vshll.u32 %v44, 16
    %v295 = vrot.slane %v293, 5
    %v296 = vsel %vm104, %v291, %v295
    %v297 = vunpack.c.l.b16 %v118
    %v298 = vunpack.c.l.b16 %v128
    %v299 = vunpack.c.l.b16 %v142
    %v300 = vunpack.c.l.b16 %v152
    %v301 = vunpack.c.l.b16 %v166
    %v302 = vunpack.c.l.b16 %v176
    %v303 = vunpack.c.l.b16 %v190
    %v304 = vunpack.c.l.b16 %v200
    %v305 = vunpack.c.l.b16 %v214
    %v306 = vunpack.c.l.b16 %v224
    %v307 = vunpack.c.l.b16 %v238
    %v308 = vunpack.c.l.b16 %v248
    %v309 = vunpack.c.l.b16 %v262
    %v310 = vunpack.c.l.b16 %v272
    %v311 = vunpack.c.l.b16 %v286
    %v312 = vunpack.c.l.b16 %v296
    %v313 = vpack.c.b16 %v298, %v297
    %v314 = vpack.c.b16 %v300, %v299
    %v315 = vpack.c.b16 %v302, %v301
    %v316 = vpack.c.b16 %v304, %v303
    %v317 = vpack.c.b16 %v306, %v305
    %v318 = vpack.c.b16 %v308, %v307
    %v319 = vpack.c.b16 %v310, %v309
    %v320 = vpack.c.b16 %v312, %v311
    %321 = vrot.lane.b32.xlu0 %v313, 8
    %v322 = vpop.permute.xlu0 %321
    %323 = vrot.lane.b32.xlu0 %v314, 8
    %v324 = vpop.permute.xlu0 %323
    %325 = vrot.lane.b32.xlu0 %v315, 8
    %v326 = vpop.permute.xlu0 %325
    %327 = vrot.lane.b32.xlu0 %v316, 8
    %v328 = vpop.permute.xlu0 %327
    %329 = vrot.lane.b32.xlu0 %v317, 8
    %v330 = vpop.permute.xlu0 %329
    %331 = vrot.lane.b32.xlu0 %v318, 8
    %v332 = vpop.permute.xlu0 %331
    %333 = vrot.lane.b32.xlu0 %v319, 8
    %v334 = vpop.permute.xlu0 %333
    %335 = vrot.lane.b32.xlu0 %v320, 8
    %v336 = vpop.permute.xlu0 %335
    %vm345 = vcmask 130112
    %346 = vst.msk [vmem:[#allocation2] sm:$0xff] %vm345, %v322
    %347 = vst.msk [vmem:[#allocation2 + $0x8] sm:$0xff] %vm345, %v324
    %348 = vst.msk [vmem:[#allocation2 + $0x10] sm:$0xff] %vm345, %v326
    %349 = vst.msk [vmem:[#allocation2 + $0x18] sm:$0xff] %vm345, %v328
    %350 = vst.msk [vmem:[#allocation2 + $0x20] sm:$0xff] %vm345, %v330
    %351 = vst.msk [vmem:[#allocation2 + $0x28] sm:$0xff] %vm345, %v332
    %352 = vst.msk [vmem:[#allocation2 + $0x30] sm:$0xff] %vm345, %v334
    %353 = vst.msk [vmem:[#allocation2 + $0x38] sm:$0xff] %vm345, %v336
    %vm362 = vcmask 1042432
    %vm363 = vcmask 1046532
    %vm364 = vmor %vm362, %vm363
    %v365 = vrot.slane %v21, 5
    %v366 = vrot.slane %v365, 4
    %v367 = vrot.slane %v22, 5
    %v368 = vsel %vm364, %v366, %v367
    %v369 = vrot.slane %v367, 4
    %v370 = vrot.slane %v23, 5
    %v371 = vsel %vm364, %v369, %v370
    %v372 = vrot.slane %v24, 5
    %v373 = vrot.slane %v372, 4
    %v374 = vrot.slane %v25, 5
    %v375 = vsel %vm364, %v373, %v374
    %v376 = vrot.slane %v374, 4
    %v377 = vrot.slane %v26, 5
    %v378 = vsel %vm364, %v376, %v377
    %v379 = vrot.slane %v27, 5
    %v380 = vrot.slane %v379, 4
    %v381 = vrot.slane %v28, 5
    %v382 = vsel %vm364, %v380, %v381
    %v383 = vrot.slane %v381, 4
    %v384 = vrot.slane %v29, 5
    %v385 = vsel %vm364, %v383, %v384
    %v386 = vrot.slane %v30, 5
    %v387 = vrot.slane %v386, 4
    %v388 = vrot.slane %v31, 5
    %v389 = vsel %vm364, %v387, %v388
    %v390 = vrot.slane %v388, 4
    %v391 = vrot.slane %v32, 5
    %v392 = vsel %vm364, %v390, %v391
    %v393 = vrot.slane %v33, 5
    %v394 = vrot.slane %v393, 4
    %v395 = vrot.slane %v34, 5
    %v396 = vsel %vm364, %v394, %v395
    %v397 = vrot.slane %v395, 4
    %v398 = vrot.slane %v35, 5
    %v399 = vsel %vm364, %v397, %v398
    %v400 = vrot.slane %v36, 5
    %v401 = vrot.slane %v400, 4
    %v402 = vrot.slane %v37, 5
    %v403 = vsel %vm364, %v401, %v402
    %v404 = vrot.slane %v402, 4
    %v405 = vrot.slane %v38, 5
    %v406 = vsel %vm364, %v404, %v405
    %v407 = vrot.slane %v39, 5
    %v408 = vrot.slane %v407, 4
    %v409 = vrot.slane %v40, 5
    %v410 = vsel %vm364, %v408, %v409
    %v411 = vrot.slane %v409, 4
    %v412 = vrot.slane %v41, 5
    %v413 = vsel %vm364, %v411, %v412
    %v414 = vrot.slane %v42, 5
    %v415 = vrot.slane %v414, 4
    %v416 = vrot.slane %v43, 5
    %v417 = vsel %vm364, %v415, %v416
    %v418 = vrot.slane %v416, 4
    %v419 = vrot.slane %v44, 5
    %v420 = vsel %vm364, %v418, %v419
    %v421 = vunpack.c.l.b16 %v368
    %v422 = vunpack.c.l.b16 %v371
    %v423 = vunpack.c.l.b16 %v375
    %v424 = vunpack.c.l.b16 %v378
    %v425 = vunpack.c.l.b16 %v382
    %v426 = vunpack.c.l.b16 %v385
    %v427 = vunpack.c.l.b16 %v389
    %v428 = vunpack.c.l.b16 %v392
    %v429 = vunpack.c.l.b16 %v396
    %v430 = vunpack.c.l.b16 %v399
    %v431 = vunpack.c.l.b16 %v403
    %v432 = vunpack.c.l.b16 %v406
    %v433 = vunpack.c.l.b16 %v410
    %v434 = vunpack.c.l.b16 %v413
    %v435 = vunpack.c.l.b16 %v417
    %v436 = vunpack.c.l.b16 %v420
    %v437 = vpack.c.b16 %v422, %v421
    %v438 = vpack.c.b16 %v424, %v423
    %v439 = vpack.c.b16 %v426, %v425
    %v440 = vpack.c.b16 %v428, %v427
    %v441 = vpack.c.b16 %v430, %v429
    %v442 = vpack.c.b16 %v432, %v431
    %v443 = vpack.c.b16 %v434, %v433
    %v444 = vpack.c.b16 %v436, %v435
    %445 = vrot.lane.b32.xlu0 %v437, 16
    %v446 = vpop.permute.xlu0 %445
    %447 = vrot.lane.b32.xlu0 %v438, 16
    %v448 = vpop.permute.xlu0 %447
    %449 = vrot.lane.b32.xlu0 %v439, 16
    %v450 = vpop.permute.xlu0 %449
    %451 = vrot.lane.b32.xlu0 %v440, 16
    %v452 = vpop.permute.xlu0 %451
    %453 = vrot.lane.b32.xlu0 %v441, 16
    %v454 = vpop.permute.xlu0 %453
    %455 = vrot.lane.b32.xlu0 %v442, 16
    %v456 = vpop.permute.xlu0 %455
    %457 = vrot.lane.b32.xlu0 %v443, 16
    %v458 = vpop.permute.xlu0 %457
    %459 = vrot.lane.b32.xlu0 %v444, 16
    %v460 = vpop.permute.xlu0 %459
    %vm469 = vcmask 195712
    %470 = vst.msk [vmem:[#allocation2] sm:$0xff] %vm469, %v446
    %471 = vst.msk [vmem:[#allocation2 + $0x8] sm:$0xff] %vm469, %v448
    %472 = vst.msk [vmem:[#allocation2 + $0x10] sm:$0xff] %vm469, %v450
    %473 = vst.msk [vmem:[#allocation2 + $0x18] sm:$0xff] %vm469, %v452
    %474 = vst.msk [vmem:[#allocation2 + $0x20] sm:$0xff] %vm469, %v454
    %475 = vst.msk [vmem:[#allocation2 + $0x28] sm:$0xff] %vm469, %v456
    %476 = vst.msk [vmem:[#allocation2 + $0x30] sm:$0xff] %vm469, %v458
    %477 = vst.msk [vmem:[#allocation2 + $0x38] sm:$0xff] %vm469, %v460
    %vm478 = vsmask.f32 2304
    %vm479 = vsmask.f32 6416
    %vm480 = vmor %vm478, %vm479
    %v481 = vrot.slane %v106, 5
    %v482 = vrot.slane %v109, 6
    %v483 = vor.u32 %v481, %v482
    %v484 = vrot.slane %v483, 4
    %v485 = vrot.slane %v119, 5
    %v486 = vrot.slane %v115, 6
    %v487 = vor.u32 %v485, %v486
    %v488 = vsel %vm480, %v484, %v487
    %v489 = vrot.slane %v487, 4
    %v490 = vshrl.u32 %v23, 16
    %v492 = vrot.slane %v490, 5
    %v493 = vrot.slane %v125, 6
    %v494 = vor.u32 %v492, %v493
    %v495 = vsel %vm480, %v489, %v494
    %v496 = vrot.slane %v130, 5
    %v497 = vrot.slane %v133, 6
    %v498 = vor.u32 %v496, %v497
    %v499 = vrot.slane %v498, 4
    %v500 = vrot.slane %v143, 5
    %v501 = vrot.slane %v139, 6
    %v502 = vor.u32 %v500, %v501
    %v503 = vsel %vm480, %v499, %v502
    %v504 = vrot.slane %v502, 4
    %v505 = vshrl.u32 %v26, 16
    %v507 = vrot.slane %v505, 5
    %v508 = vrot.slane %v149, 6
    %v509 = vor.u32 %v507, %v508
    %v510 = vsel %vm480, %v504, %v509
    %v511 = vrot.slane %v154, 5
    %v512 = vrot.slane %v157, 6
    %v513 = vor.u32 %v511, %v512
    %v514 = vrot.slane %v513, 4
    %v515 = vrot.slane %v167, 5
    %v516 = vrot.slane %v163, 6
    %v517 = vor.u32 %v515, %v516
    %v518 = vsel %vm480, %v514, %v517
    %v519 = vrot.slane %v517, 4
    %v520 = vshrl.u32 %v29, 16
    %v522 = vrot.slane %v520, 5
    %v523 = vrot.slane %v173, 6
    %v524 = vor.u32 %v522, %v523
    %v525 = vsel %vm480, %v519, %v524
    %v526 = vrot.slane %v178, 5
    %v527 = vrot.slane %v181, 6
    %v528 = vor.u32 %v526, %v527
    %v529 = vrot.slane %v528, 4
    %v530 = vrot.slane %v191, 5
    %v531 = vrot.slane %v187, 6
    %v532 = vor.u32 %v530, %v531
    %v533 = vsel %vm480, %v529, %v532
    %v534 = vrot.slane %v532, 4
    %v535 = vshrl.u32 %v32, 16
    %v537 = vrot.slane %v535, 5
    %v538 = vrot.slane %v197, 6
    %v539 = vor.u32 %v537, %v538
    %v540 = vsel %vm480, %v534, %v539
    %v541 = vrot.slane %v202, 5
    %v542 = vrot.slane %v205, 6
    %v543 = vor.u32 %v541, %v542
    %v544 = vrot.slane %v543, 4
    %v545 = vrot.slane %v215, 5
    %v546 = vrot.slane %v211, 6
    %v547 = vor.u32 %v545, %v546
    %v548 = vsel %vm480, %v544, %v547
    %v549 = vrot.slane %v547, 4
    %v550 = vshrl.u32 %v35, 16
    %v552 = vrot.slane %v550, 5
    %v553 = vrot.slane %v221, 6
    %v554 = vor.u32 %v552, %v553
    %v555 = vsel %vm480, %v549, %v554
    %v556 = vrot.slane %v226, 5
    %v557 = vrot.slane %v229, 6
    %v558 = vor.u32 %v556, %v557
    %v559 = vrot.slane %v558, 4
    %v560 = vrot.slane %v239, 5
    %v561 = vrot.slane %v235, 6
    %v562 = vor.u32 %v560, %v561
    %v563 = vsel %vm480, %v559, %v562
    %v564 = vrot.slane %v562, 4
    %v565 = vshrl.u32 %v38, 16
    %v567 = vrot.slane %v565, 5
    %v568 = vrot.slane %v245, 6
    %v569 = vor.u32 %v567, %v568
    %v570 = vsel %vm480, %v564, %v569
    %v571 = vrot.slane %v250, 5
    %v572 = vrot.slane %v253, 6
    %v573 = vor.u32 %v571, %v572
    %v574 = vrot.slane %v573, 4
    %v575 = vrot.slane %v263, 5
    %v576 = vrot.slane %v259, 6
    %v577 = vor.u32 %v575, %v576
    %v578 = vsel %vm480, %v574, %v577
    %v579 = vrot.slane %v577, 4
    %v580 = vshrl.u32 %v41, 16
    %v582 = vrot.slane %v580, 5
    %v583 = vrot.slane %v269, 6
    %v584 = vor.u32 %v582, %v583
    %v585 = vsel %vm480, %v579, %v584
    %v586 = vrot.slane %v274, 5
    %v587 = vrot.slane %v277, 6
    %v588 = vor.u32 %v586, %v587
    %v589 = vrot.slane %v588, 4
    %v590 = vrot.slane %v287, 5
    %v591 = vrot.slane %v283, 6
    %v592 = vor.u32 %v590, %v591
    %v593 = vsel %vm480, %v589, %v592
    %v594 = vrot.slane %v592, 4
    %v595 = vshrl.u32 %v44, 16
    %v597 = vrot.slane %v595, 5
    %v598 = vrot.slane %v293, 6
    %v599 = vor.u32 %v597, %v598
    %v600 = vsel %vm480, %v594, %v599
    %v601 = vunpack.c.l.b16 %v488
    %v602 = vunpack.c.l.b16 %v495
    %v603 = vunpack.c.l.b16 %v503
    %v604 = vunpack.c.l.b16 %v510
    %v605 = vunpack.c.l.b16 %v518
    %v606 = vunpack.c.l.b16 %v525
    %v607 = vunpack.c.l.b16 %v533
    %v608 = vunpack.c.l.b16 %v540
    %v609 = vunpack.c.l.b16 %v548
    %v610 = vunpack.c.l.b16 %v555
    %v611 = vunpack.c.l.b16 %v563
    %v612 = vunpack.c.l.b16 %v570
    %v613 = vunpack.c.l.b16 %v578
    %v614 = vunpack.c.l.b16 %v585
    %v615 = vunpack.c.l.b16 %v593
    %v616 = vunpack.c.l.b16 %v600
    %v617 = vpack.c.b16 %v602, %v601
    %v618 = vpack.c.b16 %v604, %v603
    %v619 = vpack.c.b16 %v606, %v605
    %v620 = vpack.c.b16 %v608, %v607
    %v621 = vpack.c.b16 %v610, %v609
    %v622 = vpack.c.b16 %v612, %v611
    %v623 = vpack.c.b16 %v614, %v613
    %v624 = vpack.c.b16 %v616, %v615
    %625 = vrot.lane.b32.xlu0 %v617, 24
    %v626 = vpop.permute.xlu0 %625
    %627 = vrot.lane.b32.xlu0 %v618, 24
    %v628 = vpop.permute.xlu0 %627
    %629 = vrot.lane.b32.xlu0 %v619, 24
    %v630 = vpop.permute.xlu0 %629
    %631 = vrot.lane.b32.xlu0 %v620, 24
    %v632 = vpop.permute.xlu0 %631
    %633 = vrot.lane.b32.xlu0 %v621, 24
    %v634 = vpop.permute.xlu0 %633
    %635 = vrot.lane.b32.xlu0 %v622, 24
    %v636 = vpop.permute.xlu0 %635
    %637 = vrot.lane.b32.xlu0 %v623, 24
    %v638 = vpop.permute.xlu0 %637
    %639 = vrot.lane.b32.xlu0 %v624, 24
    %v640 = vpop.permute.xlu0 %639
    %vm649 = vcmask 261312
    %650 = vst.msk [vmem:[#allocation2] sm:$0xff] %vm649, %v626
    %651 = vst.msk [vmem:[#allocation2 + $0x8] sm:$0xff] %vm649, %v628
    %652 = vst.msk [vmem:[#allocation2 + $0x10] sm:$0xff] %vm649, %v630
    %653 = vst.msk [vmem:[#allocation2 + $0x18] sm:$0xff] %vm649, %v632
    %654 = vst.msk [vmem:[#allocation2 + $0x20] sm:$0xff] %vm649, %v634
    %655 = vst.msk [vmem:[#allocation2 + $0x28] sm:$0xff] %vm649, %v636
    %656 = vst.msk [vmem:[#allocation2 + $0x30] sm:$0xff] %vm649, %v638
    %657 = vst.msk [vmem:[#allocation2 + $0x38] sm:$0xff] %vm649, %v640
    %vm658 = vcmask 1041408
    %vm659 = vcmask 1045508
    %vm660 = vmor %vm658, %vm659
    %v661 = vrot.slane %v21, 6
    %v662 = vrot.slane %v661, 4
    %v663 = vrot.slane %v22, 6
    %v664 = vsel %vm660, %v662, %v663
    %v665 = vrot.slane %v663, 4
    %v666 = vrot.slane %v23, 6
    %v667 = vsel %vm660, %v665, %v666
    %v668 = vrot.slane %v24, 6
    %v669 = vrot.slane %v668, 4
    %v670 = vrot.slane %v25, 6
    %v671 = vsel %vm660, %v669, %v670
    %v672 = vrot.slane %v670, 4
    %v673 = vrot.slane %v26, 6
    %v674 = vsel %vm660, %v672, %v673
    %v675 = vrot.slane %v27, 6
    %v676 = vrot.slane %v675, 4
    %v677 = vrot.slane %v28, 6
    %v678 = vsel %vm660, %v676, %v677
    %v679 = vrot.slane %v677, 4
    %v680 = vrot.slane %v29, 6
    %v681 = vsel %vm660, %v679, %v680
    %v682 = vrot.slane %v30, 6
    %v683 = vrot.slane %v682, 4
    %v684 = vrot.slane %v31, 6
    %v685 = vsel %vm660, %v683, %v684
    %v686 = vrot.slane %v684, 4
    %v687 = vrot.slane %v32, 6
    %v688 = vsel %vm660, %v686, %v687
    %v689 = vrot.slane %v33, 6
    %v690 = vrot.slane %v689, 4
    %v691 = vrot.slane %v34, 6
    %v692 = vsel %vm660, %v690, %v691
    %v693 = vrot.slane %v691, 4
    %v694 = vrot.slane %v35, 6
    %v695 = vsel %vm660, %v693, %v694
    %v696 = vrot.slane %v36, 6
    %v697 = vrot.slane %v696, 4
    %v698 = vrot.slane %v37, 6
    %v699 = vsel %vm660, %v697, %v698
    %v700 = vrot.slane %v698, 4
    %v701 = vrot.slane %v38, 6
    %v702 = vsel %vm660, %v700, %v701
    %v703 = vrot.slane %v39, 6
    %v704 = vrot.slane %v703, 4
    %v705 = vrot.slane %v40, 6
    %v706 = vsel %vm660, %v704, %v705
    %v707 = vrot.slane %v705, 4
    %v708 = vrot.slane %v41, 6
    %v709 = vsel %vm660, %v707, %v708
    %v710 = vrot.slane %v42, 6
    %v711 = vrot.slane %v710, 4
    %v712 = vrot.slane %v43, 6
    %v713 = vsel %vm660, %v711, %v712
    %v714 = vrot.slane %v712, 4
    %v715 = vrot.slane %v44, 6
    %v716 = vsel %vm660, %v714, %v715
    %v717 = vunpack.c.l.b16 %v664
    %v718 = vunpack.c.l.b16 %v667
    %v719 = vunpack.c.l.b16 %v671
    %v720 = vunpack.c.l.b16 %v674
    %v721 = vunpack.c.l.b16 %v678
    %v722 = vunpack.c.l.b16 %v681
    %v723 = vunpack.c.l.b16 %v685
    %v724 = vunpack.c.l.b16 %v688
    %v725 = vunpack.c.l.b16 %v692
    %v726 = vunpack.c.l.b16 %v695
    %v727 = vunpack.c.l.b16 %v699
    %v728 = vunpack.c.l.b16 %v702
    %v729 = vunpack.c.l.b16 %v706
    %v730 = vunpack.c.l.b16 %v709
    %v731 = vunpack.c.l.b16 %v713
    %v732 = vunpack.c.l.b16 %v716
    %v733 = vpack.c.b16 %v718, %v717
    %v734 = vpack.c.b16 %v720, %v719
    %v735 = vpack.c.b16 %v722, %v721
    %v736 = vpack.c.b16 %v724, %v723
    %v737 = vpack.c.b16 %v726, %v725
    %v738 = vpack.c.b16 %v728, %v727
    %v739 = vpack.c.b16 %v730, %v729
    %v740 = vpack.c.b16 %v732, %v731
    %741 = vrot.lane.b32.xlu0 %v733, 32
    %v742 = vpop.permute.xlu0 %741
    %743 = vrot.lane.b32.xlu0 %v734, 32
    %v744 = vpop.permute.xlu0 %743
    %745 = vrot.lane.b32.xlu0 %v735, 32
    %v746 = vpop.permute.xlu0 %745
    %747 = vrot.lane.b32.xlu0 %v736, 32
    %v748 = vpop.permute.xlu0 %747
    %749 = vrot.lane.b32.xlu0 %v737, 32
    %v750 = vpop.permute.xlu0 %749
    %751 = vrot.lane.b32.xlu0 %v738, 32
    %v752 = vpop.permute.xlu0 %751
    %753 = vrot.lane.b32.xlu0 %v739, 32
    %v754 = vpop.permute.xlu0 %753
    %755 = vrot.lane.b32.xlu0 %v740, 32
    %v756 = vpop.permute.xlu0 %755
    %vm765 = vcmask 326912
    %766 = vst.msk [vmem:[#allocation2] sm:$0xff] %vm765, %v742
    %767 = vst.msk [vmem:[#allocation2 + $0x8] sm:$0xff] %vm765, %v744
    %768 = vst.msk [vmem:[#allocation2 + $0x10] sm:$0xff] %vm765, %v746
    %769 = vst.msk [vmem:[#allocation2 + $0x18] sm:$0xff] %vm765, %v748
    %770 = vst.msk [vmem:[#allocation2 + $0x20] sm:$0xff] %vm765, %v750
    %771 = vst.msk [vmem:[#allocation2 + $0x28] sm:$0xff] %vm765, %v752
    %772 = vst.msk [vmem:[#allocation2 + $0x30] sm:$0xff] %vm765, %v754
    %773 = vst.msk [vmem:[#allocation2 + $0x38] sm:$0xff] %vm765, %v756
    %v774 = vld [vmem:[#allocation2] sm:$0xff]
    %v775 = vld [vmem:[#allocation2 + $0x8] sm:$0xff]
    %v776 = vld [vmem:[#allocation2 + $0x10] sm:$0xff]
    %v777 = vld [vmem:[#allocation2 + $0x18] sm:$0xff]
    %v778 = vld [vmem:[#allocation2 + $0x20] sm:$0xff]
    %v779 = vld [vmem:[#allocation2 + $0x28] sm:$0xff]
    %v780 = vld [vmem:[#allocation2 + $0x30] sm:$0xff]
    %v781 = vld [vmem:[#allocation2 + $0x38] sm:$0xff]
    %v782 = vld [vmem:[%s1] sm:$0xf]
    %v783 = vld [vmem:[%s1 + $0x4] sm:$0xf]
    %v784 = vld [vmem:[%s1 + $0x8] sm:$0xf]
    %v785 = vld [vmem:[%s1 + $0xc] sm:$0xf]
    %v786 = vld [vmem:[%s1 + $0x10] sm:$0xf]
    %v792 = vunpack.c.l.b16 %v782
    %v793 = vunpack.c.l.b16 %v783
    %v794 = vunpack.c.l.b16 %v784
    %v795 = vunpack.c.l.b16 %v785
    %v796 = vunpack.c.l.b16 %v786
    %v797 = vpack.c.b16 %v793, %v792
    %v798 = vpack.c.b16 %v795, %v794
    %v799 = vpack.c.b16 %v796, %v796
    %vm802 = vcmask 326656
    %v804 = vsel %vm802, %v774, 0
    %v807 = vsel %vm802, %v775, 0
    %v810 = vsel %vm802, %v776, 0
    %v813 = vsel %vm802, %v777, 0
    %v816 = vsel %vm802, %v778, 0
    %v819 = vsel %vm802, %v779, 0
    %v822 = vsel %vm802, %v780, 0
    %v825 = vsel %vm802, %v781, 0
    %vm827 = vcmask 1043456
    %v829 = vsel %vm827, %v799, 0
    %831 = vmatprep.subr.bf16.mxu0 0
    %832 = vmatpush1.bf16.msra.mxu0 %v797
    %833 = vmatprep.subr.bf16.mxu0 0
    %834 = vmatpush1.bf16.msra.mxu0 %v798
    %835 = vmatprep.subr.bf16.mxu0 0
    %836 = vmatpush1.bf16.msra.mxu0 %v829
    %837 = vmatprep.subr.bf16.mxu0 0
    %838 = vmatpush1.bf16.msra.mxu0 0
    %839 = vmatprep.subr.bf16.mxu0 0
    %840 = vmatpush1.bf16.msra.mxu0 0
    %841 = vmatprep.subr.bf16.mxu0 0
    %842 = vmatpush1.bf16.msra.mxu0 0
    %843 = vmatprep.subr.bf16.mxu0 0
    %844 = vmatpush1.bf16.msra.mxu0 0
    %845 = vmatprep.subr.bf16.mxu0 0
    %846 = vmatpush1.bf16.msra.mxu0 0
    %847 = vmatprep.subr.bf16.mxu0 0
    %848 = vmatpush1.bf16.msra.mxu0 0
    %849 = vmatprep.subr.bf16.mxu0 0
    %850 = vmatpush1.bf16.msra.mxu0 0
    %851 = vmatprep.subr.bf16.mxu0 0
    %852 = vmatpush1.bf16.msra.mxu0 0
    %853 = vmatprep.subr.bf16.mxu0 0
    %854 = vmatpush1.bf16.msra.mxu0 0
    %855 = vmatprep.subr.bf16.mxu0 0
    %856 = vmatpush1.bf16.msra.mxu0 0
    %857 = vmatprep.subr.bf16.mxu0 0
    %858 = vmatpush1.bf16.msra.mxu0 0
    %859 = vmatprep.subr.bf16.mxu0 0
    %860 = vmatpush1.bf16.msra.mxu0 0
    %861 = vmatprep.subr.bf16.mxu0 0
    %862 = vmatpush1.bf16.msra.mxu0 0
    %863 = vmatprep.mubr.bf16.mxu0 0
    %864 = vmatmul.mubr.bf16.gmra.mrb[0].mxu0 %v804
    %v865 = vpop.f32.mrb[0].mxu0
    %v866 = vadd.f32 0.0, %v865
    %v867 = vpop.f32.mrb[0].mxu0
    %v868 = vpop.f32.mrb[0].mxu0
    %v869 = vadd.f32 0.0, %v868
    %v870 = vpop.f32.mrb[0].mxu0
    %871 = vmatprep.mubr.bf16.mxu0 0
    %872 = vmatmul.mubr.bf16.gmra.mrb[0].mxu0 %v807
    %v873 = vpop.f32.mrb[0].mxu0
    %v874 = vadd.f32 0.0, %v873
    %v875 = vpop.f32.mrb[0].mxu0
    %v876 = vpop.f32.mrb[0].mxu0
    %v877 = vadd.f32 0.0, %v876
    %v878 = vpop.f32.mrb[0].mxu0
    %879 = vmatprep.mubr.bf16.mxu0 0
    %880 = vmatmul.mubr.bf16.gmra.mrb[0].mxu0 %v810
    %v881 = vpop.f32.mrb[0].mxu0
    %v882 = vadd.f32 0.0, %v881
    %v883 = vpop.f32.mrb[0].mxu0
    %v884 = vpop.f32.mrb[0].mxu0
    %v885 = vadd.f32 0.0, %v884
    %v886 = vpop.f32.mrb[0].mxu0
    %887 = vmatprep.mubr.bf16.mxu0 0
    %888 = vmatmul.mubr.bf16.gmra.mrb[0].mxu0 %v813
    %v889 = vpop.f32.mrb[0].mxu0
    %v890 = vadd.f32 0.0, %v889
    %v891 = vpop.f32.mrb[0].mxu0
    %v892 = vpop.f32.mrb[0].mxu0
    %v893 = vadd.f32 0.0, %v892
    %v894 = vpop.f32.mrb[0].mxu0
    %895 = vmatprep.mubr.bf16.mxu0 0
    %896 = vmatmul.mubr.bf16.gmra.mrb[0].mxu0 %v816
    %v897 = vpop.f32.mrb[0].mxu0
    %v898 = vadd.f32 0.0, %v897
    %v899 = vpop.f32.mrb[0].mxu0
    %v900 = vpop.f32.mrb[0].mxu0
    %v901 = vadd.f32 0.0, %v900
    %v902 = vpop.f32.mrb[0].mxu0
    %903 = vmatprep.mubr.bf16.mxu0 0
    %904 = vmatmul.mubr.bf16.gmra.mrb[0].mxu0 %v819
    %v905 = vpop.f32.mrb[0].mxu0
    %v906 = vadd.f32 0.0, %v905
    %v907 = vpop.f32.mrb[0].mxu0
    %v908 = vpop.f32.mrb[0].mxu0
    %v909 = vadd.f32 0.0, %v908
    %v910 = vpop.f32.mrb[0].mxu0
    %911 = vmatprep.mubr.bf16.mxu0 0
    %912 = vmatmul.mubr.bf16.gmra.mrb[0].mxu0 %v822
    %v913 = vpop.f32.mrb[0].mxu0
    %v914 = vadd.f32 0.0, %v913
    %v915 = vpop.f32.mrb[0].mxu0
    %v916 = vpop.f32.mrb[0].mxu0
    %v917 = vadd.f32 0.0, %v916
    %v918 = vpop.f32.mrb[0].mxu0
    %919 = vmatprep.mubr.bf16.mxu0 0
    %920 = vmatmul.mubr.bf16.gmra.mrb[0].mxu0 %v825
    %v921 = vpop.f32.mrb[0].mxu0
    %v922 = vadd.f32 0.0, %v921
    %v923 = vpop.f32.mrb[0].mxu0
    %v924 = vpop.f32.mrb[0].mxu0
    %v925 = vadd.f32 0.0, %v924
    %v926 = vpop.f32.mrb[0].mxu0
    %927 = vdwg.mxu0
    %s928 = smul.u32 0, 16
    %v929 = vlaneseq
    %v930 = vshrl.u32 %v929, 7
    %v931 = vadd.s32 %v930, 8
    %v932 = vstv %s928
    %v933 = vadd.s32 %v932, %v930
    %v934 = vadd.s32 %v932, %v931
    %vm935 = vcmp.lt.s32.totalorder %v933, 12
    %vm936 = vcmp.lt.s32.totalorder %v934, 12
    %v937 = vsel %vm935, 1, 0
    %v938 = vsel %vm936, 1, 0
    %vm939 = vcmp.eq.s32.totalorder %v937, 1
    %vm940 = vcmp.eq.s32.totalorder %v938, 1
    %v941 = vsel %vm939, %v866, -inf
    %v942 = vsel %vm940, %v869, -inf
    %v943 = vsel %vm939, %v874, -inf
    %v944 = vsel %vm940, %v877, -inf
    %v945 = vsel %vm939, %v882, -inf
    %v946 = vsel %vm940, %v885, -inf
    %v947 = vsel %vm939, %v890, -inf
    %v948 = vsel %vm940, %v893, -inf
    %v949 = vsel %vm939, %v898, -inf
    %v950 = vsel %vm940, %v901, -inf
    %v951 = vsel %vm939, %v906, -inf
    %v952 = vsel %vm940, %v909, -inf
    %v953 = vsel %vm939, %v914, -inf
    %v954 = vsel %vm940, %v917, -inf
    %v955 = vsel %vm939, %v922, -inf
    %v956 = vsel %vm940, %v925, -inf
    %v957 = vld [vmem:[#allocation3] sm:$0xff]
    %v958 = vmax.f32 %v941, %v942
    %v959 = vrot.slane %v958, 4
    %v960 = vmax.f32 %v958, %v959
    %v961 = vrot.slane %v960, 2
    %v962 = vmax.f32 %v960, %v961
    %v963 = vrot.slane %v962, 1
    %v964 = vmax.f32 %v962, %v963
    %v965 = vmax.f32 %v943, %v944
    %v966 = vrot.slane %v965, 4
    %v967 = vmax.f32 %v965, %v966
    %v968 = vrot.slane %v967, 2
    %v969 = vmax.f32 %v967, %v968
    %v970 = vrot.slane %v969, 1
    %v971 = vmax.f32 %v969, %v970
    %v972 = vmax.f32 %v945, %v946
    %v973 = vrot.slane %v972, 4
    %v974 = vmax.f32 %v972, %v973
    %v975 = vrot.slane %v974, 2
    %v976 = vmax.f32 %v974, %v975
    %v977 = vrot.slane %v976, 1
    %v978 = vmax.f32 %v976, %v977
    %v979 = vmax.f32 %v947, %v948
    %v980 = vrot.slane %v979, 4
    %v981 = vmax.f32 %v979, %v980
    %v982 = vrot.slane %v981, 2
    %v983 = vmax.f32 %v981, %v982
    %v984 = vrot.slane %v983, 1
    %v985 = vmax.f32 %v983, %v984
    %v986 = vmax.f32 %v949, %v950
    %v987 = vrot.slane %v986, 4
    %v988 = vmax.f32 %v986, %v987
    %v989 = vrot.slane %v988, 2
    %v990 = vmax.f32 %v988, %v989
    %v991 = vrot.slane %v990, 1
    %v992 = vmax.f32 %v990, %v991
    %v993 = vmax.f32 %v951, %v952
    %v994 = vrot.slane %v993, 4
    %v995 = vmax.f32 %v993, %v994
    %v996 = vrot.slane %v995, 2
    %v997 = vmax.f32 %v995, %v996
    %v998 = vrot.slane %v997, 1
    %v999 = vmax.f32 %v997, %v998
    %v1000 = vmax.f32 %v953, %v954
    %v1001 = vrot.slane %v1000, 4
    %v1002 = vmax.f32 %v1000, %v1001
    %v1003 = vrot.slane %v1002, 2
    %v1004 = vmax.f32 %v1002, %v1003
    %v1005 = vrot.slane %v1004, 1
    %v1006 = vmax.f32 %v1004, %v1005
    %v1007 = vmax.f32 %v955, %v956
    %v1008 = vrot.slane %v1007, 4
    %v1009 = vmax.f32 %v1007, %v1008
    %v1010 = vrot.slane %v1009, 2
    %v1011 = vmax.f32 %v1009, %v1010
    %v1012 = vrot.slane %v1011, 1
    %v1013 = vmax.f32 %v1011, %v1012
    %vm1022 = vcmask 1041409
    %v1023 = vsel %vm1022, %v971, %v964
    %vm1024 = vcmask 1042434
    %v1025 = vsel %vm1024, %v978, %v1023
    %vm1026 = vcmask 1043459
    %v1027 = vsel %vm1026, %v985, %v1025
    %vm1028 = vcmask 1044484
    %v1029 = vsel %vm1028, %v992, %v1027
    %vm1030 = vcmask 1045509
    %v1031 = vsel %vm1030, %v999, %v1029
    %vm1032 = vcmask 1046534
    %v1033 = vsel %vm1032, %v1006, %v1031
    %vm1034 = vcmask 1047559
    %v1035 = vsel %vm1034, %v1013, %v1033
    %v1037 = vmax.f32 %v957, %v1035
    %1038 = vst [vmem:[#allocation3] sm:$0xff] %v1037
    // Predicated region
    $region18: #{tpu_custom_call.1} parent=1 // pred_check
      %p1039 = pneg %p16
    $region19: #{tpu_custom_call.1} parent=1 // pred_check_branch
      %1041 = sbr.rel (%p1039) target = $region21
    $region20: #{tpu_custom_call.1} parent=1 // pred_region
      %v1042 = vld [vmem:[#allocation3] sm:$0xff]
      %v1043 = vld [vmem:[%s2] sm:$0x1]
      %v1045 = vlaneseq
      %v1046 = vshrl.u32 %v1045, 7
      %v1047 = vsub.s32 0, %v1046
      %v1048 = vrot.slane %v1043, %v1047
      %v1050 = vadd.f32 %v1042, %v1048
      %v1051 = vmax.f32 %v1050, 0.0
      %1052 = vst [vmem:[#allocation4] sm:$0xff] %v1051
    $region21: #{tpu_custom_call.1} parent=1 // pred_fallthru
      _
    // Predicated region
    $region22: #{tpu_custom_call.1} parent=1 // pred_check
      _
    $region23: #{tpu_custom_call.1} parent=1 // pred_check_branch
      %1054 = sbr.rel (0) target = $region25
    $region24: #{tpu_custom_call.1} parent=1 // pred_region
      %s1056 = ssub.s32 128, 128
      %1057 = vsyncadd [#allocation5], %s1056
      %s1059 = sshll.u32 [#allocation4], 4
      %s1060 = int_to_ptr.vmem [resolvable:$true] %s1059
      %1062 = dma.vmem_to_hbm [thread:$0]  %s1060, 128, %s3, [#allocation5]
    $region25: #{tpu_custom_call.1} parent=1 // pred_fallthru
      _
    // Predicated region
    $region26: #{tpu_custom_call.1} parent=1 // pred_check
      _
    $region27: #{tpu_custom_call.1} parent=1 // pred_check_branch
      %1064 = sbr.rel (0) target = $region29
    $region28: #{tpu_custom_call.1} parent=1 // pred_region
      %1065 = dma.done [#allocation5], 128
    $region29: #{tpu_custom_call.1} parent=1 // pred_fallthru
      _
    %1066 = vsyncpa [#allocation5], 1

</llo_original>
